<compile_context>
chip_gen: v5e
topology: v5e:2x2
jax: 0.10.0
libtpu: 0.0.40
codegen_flags: <defaults>
</compile_context>

<pallas_src>
import functools

import jax
import jax.numpy as jnp
from jax.experimental import pallas as pl
from jax.experimental.pallas import tpu as pltpu


def _round_up(x, m):
    return ((x + m - 1) // m) * m


def _pad2(x, rows, cols, dtype):
    out = jnp.zeros((rows, cols), dtype)
    return out.at[:x.shape[0], :x.shape[1]].set(x.astype(dtype))


# ----------------------------------------------------------------------------
# Pallas kernel: one (node_tile, edge_tile) step of the RGCN layer forward.
# ----------------------------------------------------------------------------
def rgcn_kernel(src_ref, dst_ref, rel_ref, h_full_ref, h_tile_ref, prev_ref,
                norm_ref, w_nbr_ref, w_loop_ref, w_skip_ref, b_skip_ref,
                out_ref, acc_ref):
    i = pl.program_id(0)          # node tile (parallel)
    j = pl.program_id(1)          # edge tile (reduction)

    tn = acc_ref.shape[0]         # node tile size
    n_nodes = h_full_ref.shape[0]
    te = src_ref.shape[1]         # edge tile size

    @pl.when(j == 0)
    def _():
        acc_ref[...] = jnp.zeros_like(acc_ref)

    # --- msg_func: gather h[src] via an in-kernel 0/1 mask (stays on MXU) ---
    src = src_ref[...]                                          # [1, TE] int32
    node_ids = jax.lax.broadcasted_iota(jnp.int32, (n_nodes, te), 0)
    gather_mask = jnp.where(node_ids == src, 1.0, 0.0).astype(jnp.bfloat16)
    # Contract the node axis (transposed-LHS) -> exact gather, f32 out.
    h_src = jax.lax.dot_general(
        gather_mask, h_full_ref[...],
        dimension_numbers=(((0,), (0,)), ((), ())),
        preferred_element_type=jnp.float32)                     # [TE, Dp]

    # comp == 'sub'  (the reference module uses '+' for 'sub')
    msg_in = (h_src + rel_ref[...].astype(jnp.float32)).astype(jnp.bfloat16)
    msg = jnp.dot(msg_in, w_nbr_ref[...],
                  preferred_element_type=jnp.float32)           # [TE, Dp]

    # --- fn.sum(msg='msg', out='h'): scatter-add onto this node tile ---
    dst = dst_ref[...]                                          # [1, TE] int32
    row_ids = jax.lax.broadcasted_iota(jnp.int32, (tn, te), 0) + i * tn
    scatter_mask = jnp.where(row_ids == dst, 1.0, 0.0).astype(jnp.bfloat16)
    acc_ref[...] += jnp.dot(scatter_mask, msg.astype(jnp.bfloat16),
                            preferred_element_type=jnp.float32)

    # --- finalize: apply_func (norm), self loop, skip gate, ReLU ---
    @pl.when(j == pl.num_programs(1) - 1)
    def _():
        node_repr = acc_ref[...] * norm_ref[...]                # agg * norm
        node_repr = node_repr + jnp.dot(h_tile_ref[...], w_loop_ref[...],
                                        preferred_element_type=jnp.float32)
        prev = prev_ref[...]                                    # f32 tail
        gate = jax.nn.sigmoid(
            jnp.dot(prev.astype(jnp.bfloat16), w_skip_ref[...],
                    preferred_element_type=jnp.float32) + b_skip_ref[...])
        node_repr = gate * node_repr + (1.0 - gate) * prev
        out_ref[...] = jnp.maximum(node_repr, 0.0).astype(out_ref.dtype)


# ----------------------------------------------------------------------------
# Wrapper: pads to TPU-friendly shapes, builds bf16 operands, calls pallas_call.
# ----------------------------------------------------------------------------
@jax.jit
def rgcn_layer_forward(h, emb_rel, src, dst, etype, norm, prev_h,
                       weight_neighbor, loop_weight,
                       skip_connect_weight, skip_connect_bias):
    N, D = h.shape
    E = src.shape[0]

    Dp = _round_up(D, 128)                    # lane-dense feature dim
    Np = _round_up(N, 8)
    TN = min(Np, 256)                         # node tile (multiple of 8)
    Np = _round_up(Np, TN)
    TE = min(512, _round_up(E, 128))          # edge tile (multiple of 128)
    Ep = _round_up(E, TE)

    # bf16 MXU operands; f32 for gating / norm / bias / output.
    h_p = _pad2(h, Np, Dp, jnp.bfloat16)
    prev_p = _pad2(prev_h, Np, Dp, jnp.float32)
    norm_p = _pad2(norm, Np, 1, jnp.float32)
    rel_e = _pad2(emb_rel[etype], Ep, Dp, jnp.bfloat16)   # gather rel in wrapper
    w_nbr = _pad2(weight_neighbor, Dp, Dp, jnp.bfloat16)
    w_loop = _pad2(loop_weight, Dp, Dp, jnp.bfloat16)
    w_skip = _pad2(skip_connect_weight, Dp, Dp, jnp.bfloat16)
    b_skip = _pad2(skip_connect_bias.reshape(1, D), 1, Dp, jnp.float32)

    src_p = jnp.zeros((1, Ep), jnp.int32).at[0, :E].set(src.astype(jnp.int32))
    # Padded edges get dst == Np (out of range) -> never match any node row.
    dst_p = jnp.full((1, Ep), Np, jnp.int32).at[0, :E].set(dst.astype(jnp.int32))

    n_i, n_j = Np // TN, Ep // TE

    operands = (src_p, dst_p, rel_e, h_p, h_p, prev_p, norm_p,
                w_nbr, w_loop, w_skip, b_skip)

    in_specs = [
        pl.BlockSpec((1, TE), lambda i, j: (0, j)),        # src ids (edge tile)
        pl.BlockSpec((1, TE), lambda i, j: (0, j)),        # dst ids (edge tile)
        pl.BlockSpec((TE, Dp), lambda i, j: (j, 0)),       # emb_rel[etype] tile
        pl.BlockSpec((Np, Dp), lambda i, j: (0, 0)),       # h (resident, gather)
        pl.BlockSpec((TN, Dp), lambda i, j: (i, 0)),       # h (node tile, loop)
        pl.BlockSpec((TN, Dp), lambda i, j: (i, 0)),       # prev_h (node tile)
        pl.BlockSpec((TN, 1), lambda i, j: (i, 0)),        # norm (node tile)
        pl.BlockSpec((Dp, Dp), lambda i, j: (0, 0)),       # weight_neighbor
        pl.BlockSpec((Dp, Dp), lambda i, j: (0, 0)),       # loop_weight
        pl.BlockSpec((Dp, Dp), lambda i, j: (0, 0)),       # skip_connect_weight
        pl.BlockSpec((1, Dp), lambda i, j: (0, 0)),        # skip_connect_bias
    ]

    flops = (n_i * (2 * Np * Ep * Dp + 2 * Ep * Dp * Dp)   # gather + msg matmuls
             + 2 * Np * Ep * Dp                            # scatter-add
             + 2 * 2 * Np * Dp * Dp)                       # self loop + skip gate
    bytes_acc = (sum(int(x.size) * x.dtype.itemsize for x in operands)
                 + Np * Dp * 4)

    out_padded = pl.pallas_call(
        rgcn_kernel,
        out_shape=jax.ShapeDtypeStruct((Np, Dp), jnp.float32),
        grid=(n_i, n_j),
        in_specs=in_specs,
        out_specs=pl.BlockSpec((TN, Dp), lambda i, j: (i, 0)),
        scratch_shapes=[pltpu.VMEM((TN, Dp), jnp.float32)],
        compiler_params=pltpu.CompilerParams(
            dimension_semantics=("parallel", "arbitrary"),
            vmem_limit_bytes=48 * 1024 * 1024),
        cost_estimate=pl.CostEstimate(
            flops=flops, transcendentals=Np * Dp, bytes_accessed=bytes_acc),
    )(*operands)

    return out_padded[:N, :D]


# ----------------------------------------------------------------------------
# Pure-JAX reference (for a sanity check).
# ----------------------------------------------------------------------------
def rgcn_reference(h, emb_rel, src, dst, etype, norm, prev_h,
                   w_nbr, w_loop, w_skip, b_skip):
    N = h.shape[0]
    loop_message = h @ w_loop
    msg = (h[src] + emb_rel[etype]) @ w_nbr
    agg = jax.ops.segment_sum(msg, dst, num_segments=N)
    node_repr = agg * norm + loop_message
    gate = jax.nn.sigmoid(prev_h @ w_skip + b_skip)
    node_repr = gate * node_repr + (1.0 - gate) * prev_h
    return jnp.maximum(node_repr, 0.0)


# ----------------------------------------------------------------------------
# Deterministic parameter init (xavier_uniform, gain = sqrt(2) for 'relu').
# ----------------------------------------------------------------------------
def xavier_uniform(key, shape, gain):
    fan_in, fan_out = shape[0], shape[1]
    bound = gain * jnp.sqrt(6.0 / (fan_in + fan_out))
    return jax.random.uniform(key, shape, jnp.float32, -bound, bound)


if __name__ == "__main__":
    # Small synthetic graph: N nodes, E edges, R relation types, D features.
    N, E, R, D = 16, 64, 8, 32
    gain = jnp.sqrt(2.0)  # nn.init.calculate_gain('relu')

    key = jax.random.PRNGKey(0)
    keys = jax.random.split(key, 10)

    # Parameters (RGCNLayer.__init__ with self_loop=True, skip_connect=True).
    weight_neighbor = xavier_uniform(keys[0], (D, D), gain)
    loop_weight = xavier_uniform(keys[1], (D, D), gain)
    skip_connect_weight = xavier_uniform(keys[2], (D, D), gain)
    skip_connect_bias = jnp.zeros((D,), jnp.float32)  # nn.init.zeros_

    # Graph data / inputs.
    h = jax.random.normal(keys[3], (N, D), jnp.float32)        # g.ndata['h']
    prev_h = jax.random.normal(keys[4], (N, D), jnp.float32)   # prev_h
    emb_rel = xavier_uniform(keys[5], (R, D), gain)            # emb_rel
    src = jax.random.randint(keys[6], (E,), 0, N)              # edge src ids
    dst = jax.random.randint(keys[7], (E,), 0, N)              # edge dst ids
    etype = jax.random.randint(keys[8], (E,), 0, R)            # edges.data['type']
    # g.ndata['norm'] : typically 1/in_degree, shape [N, 1]
    deg = jax.ops.segment_sum(jnp.ones((E,), jnp.float32), dst, num_segments=N)
    norm = (1.0 / jnp.maximum(deg, 1.0)).reshape(N, 1)

    # TODO(synk): dropout (nn.Dropout) not implemented — layer built with dropout=0.0.

    out = rgcn_layer_forward(h, emb_rel, src, dst, etype, norm, prev_h,
                             weight_neighbor, loop_weight,
                             skip_connect_weight, skip_connect_bias)
    out = jax.block_until_ready(out)

    # Reference with bf16-rounded matmul operands (kernel uses bf16 MXU inputs,
    # f32 accumulation), so the comparison checks graph/gating structure.
    def bf16_round(x):
        return x.astype(jnp.bfloat16).astype(jnp.float32)

    ref = rgcn_reference(bf16_round(h), bf16_round(emb_rel), src, dst, etype,
                         norm, prev_h,
                         bf16_round(weight_neighbor), bf16_round(loop_weight),
                         bf16_round(skip_connect_weight),
                         skip_connect_bias.reshape(1, D))
    assert out.shape == (N, D)
    err = float(jnp.max(jnp.abs(out - ref)))
    assert jnp.allclose(out, ref, atol=3e-2, rtol=3e-2), f"max abs err {err}"

    print("KERNEL_OK")
</pallas_src>

<mosaic_0001>
module attributes {stable_mosaic.version = 11 : i64} {
  func.func @rgcn_kernel(%arg0: i32, %arg1: i32, %arg2: memref<1x128xi32, #tpu.memory_space<vmem>>, %arg3: memref<1x128xi32, #tpu.memory_space<vmem>>, %arg4: memref<128x128xbf16, #tpu.memory_space<vmem>>, %arg5: memref<16x128xbf16, #tpu.memory_space<vmem>>, %arg6: memref<16x128xbf16, #tpu.memory_space<vmem>>, %arg7: memref<16x128xf32, #tpu.memory_space<vmem>>, %arg8: memref<16x1xf32, #tpu.memory_space<vmem>>, %arg9: memref<128x128xbf16, #tpu.memory_space<vmem>>, %arg10: memref<128x128xbf16, #tpu.memory_space<vmem>>, %arg11: memref<128x128xbf16, #tpu.memory_space<vmem>>, %arg12: memref<1x128xf32, #tpu.memory_space<vmem>>, %arg13: memref<16x128xf32, #tpu.memory_space<vmem>>, %arg14: memref<16x128xf32, #tpu.memory_space<vmem>>) attributes {dimension_semantics = [#tpu.dimension_semantics<parallel>, #tpu.dimension_semantics<arbitrary>], iteration_bounds = array<i64: 1, 1>, scalar_prefetch = 0 : i64, scratch_operands = 1 : i64, tpu.core_type = #tpu.core_type<tc>, window_params = [{transform_indices = @transform_0, window_bounds = array<i64: 1, 128>}, {transform_indices = @transform_1, window_bounds = array<i64: 1, 128>}, {transform_indices = @transform_2, window_bounds = array<i64: 128, 128>}, {pipeline_mode = #tpu.pipeline_mode<synchronous>, transform_indices = @transform_3, window_bounds = array<i64: 16, 128>}, {transform_indices = @transform_4, window_bounds = array<i64: 16, 128>}, {transform_indices = @transform_5, window_bounds = array<i64: 16, 128>}, {transform_indices = @transform_6, window_bounds = array<i64: 16, 1>}, {pipeline_mode = #tpu.pipeline_mode<synchronous>, transform_indices = @transform_7, window_bounds = array<i64: 128, 128>}, {pipeline_mode = #tpu.pipeline_mode<synchronous>, transform_indices = @transform_8, window_bounds = array<i64: 128, 128>}, {pipeline_mode = #tpu.pipeline_mode<synchronous>, transform_indices = @transform_9, window_bounds = array<i64: 128, 128>}, {pipeline_mode = #tpu.pipeline_mode<synchronous>, transform_indices = @transform_10, window_bounds = array<i64: 1, 128>}, {transform_indices = @transform_11, window_bounds = array<i64: 16, 128>}]} {
    %c0_i32 = arith.constant 0 : i32
    %0 = arith.cmpi eq, %arg1, %c0_i32 : i32
    %1 = arith.extui %0 : i1 to i32
    %c0_i32_0 = arith.constant 0 : i32
    %2 = arith.cmpi ne, %1, %c0_i32_0 : i32
    scf.if %2 {
      %cst_22 = arith.constant 0.000000e+00 : f32
      %38 = vector.broadcast %cst_22 : f32 to vector<16x128xf32>
      %c0_23 = arith.constant 0 : index
      %c0_24 = arith.constant 0 : index
      %39 = vector.load %arg14[%c0_23, %c0_24] : memref<16x128xf32, #tpu.memory_space<vmem>>, vector<16x128xf32>
      tpu.vector_store %arg14[%c0_23, %c0_24], %38 {strides = array<i32>} : memref<16x128xf32, #tpu.memory_space<vmem>>, vector<16x128xf32>,
    } else {
    }
    %c0 = arith.constant 0 : index
    %c0_1 = arith.constant 0 : index
    %3 = vector.load %arg2[%c0, %c0_1] : memref<1x128xi32, #tpu.memory_space<vmem>>, vector<1x128xi32>
    %4 = tpu.iota {dimensions = array<i32: 0>} : vector<16x128xi32>
    %5 = vector.broadcast %3 : vector<1x128xi32> to vector<16x128xi32>
    %6 = arith.cmpi eq, %4, %5 : vector<16x128xi32>
    %cst = arith.constant 1.000000e+00 : f32
    %cst_2 = arith.constant 0.000000e+00 : f32
    %7 = vector.broadcast %cst : f32 to vector<16x128xf32>
    %8 = vector.broadcast %cst_2 : f32 to vector<16x128xf32>
    %9 = arith.select %6, %7, %8 : vector<16x128xi1>, vector<16x128xf32>
    %10 = arith.truncf %9 : vector<16x128xf32> to vector<16x128xbf16>
    %c0_3 = arith.constant 0 : index
    %c0_4 = arith.constant 0 : index
    %11 = vector.load %arg5[%c0_3, %c0_4] : memref<16x128xbf16, #tpu.memory_space<vmem>>, vector<16x128xbf16>
    %cst_5 = arith.constant dense<0.000000e+00> : vector<128x128xf32>
    %12 = tpu.matmul %10, %11, %cst_5 {dimension_numbers = #tpu.dot_dimension_numbers<[0], [0], [1], [1], [0, 1, 1, 1], [], []>} : vector<16x128xbf16>, vector<16x128xbf16>, vector<128x128xf32> -> vector<128x128xf32>
    %c0_6 = arith.constant 0 : index
    %c0_7 = arith.constant 0 : index
    %13 = vector.load %arg4[%c0_6, %c0_7] : memref<128x128xbf16, #tpu.memory_space<vmem>>, vector<128x128xbf16>
    %14 = arith.extf %13 : vector<128x128xbf16> to vector<128x128xf32>
    %15 = arith.addf %12, %14 : vector<128x128xf32>
    %16 = arith.truncf %15 : vector<128x128xf32> to vector<128x128xbf16>
    %c0_8 = arith.constant 0 : index
    %c0_9 = arith.constant 0 : index
    %17 = vector.load %arg9[%c0_8, %c0_9] : memref<128x128xbf16, #tpu.memory_space<vmem>>, vector<128x128xbf16>
    %cst_10 = arith.constant dense<0.000000e+00> : vector<128x128xf32>
    %18 = tpu.matmul %16, %17, %cst_10 {dimension_numbers = #tpu.dot_dimension_numbers<[1], [0], [0], [1], [0, 0, 1, 1], [], []>} : vector<128x128xbf16>, vector<128x128xbf16>, vector<128x128xf32> -> vector<128x128xf32>
    %c0_11 = arith.constant 0 : index
    %c0_12 = arith.constant 0 : index
    %19 = vector.load %arg3[%c0_11, %c0_12] : memref<1x128xi32, #tpu.memory_space<vmem>>, vector<1x128xi32>
    %20 = tpu.iota {dimensions = array<i32: 0>} : vector<16x128xi32>
    %c16_i32 = arith.constant 16 : i32
    %21 = arith.muli %arg0, %c16_i32 : i32
    %22 = vector.broadcast %21 : i32 to vector<16x128xi32>
    %23 = arith.addi %20, %22 : vector<16x128xi32>
    %24 = vector.broadcast %19 : vector<1x128xi32> to vector<16x128xi32>
    %25 = arith.cmpi eq, %23, %24 : vector<16x128xi32>
    %cst_13 = arith.constant 1.000000e+00 : f32
    %cst_14 = arith.constant 0.000000e+00 : f32
    %26 = vector.broadcast %cst_13 : f32 to vector<16x128xf32>
    %27 = vector.broadcast %cst_14 : f32 to vector<16x128xf32>
    %28 = arith.select %25, %26, %27 : vector<16x128xi1>, vector<16x128xf32>
    %29 = arith.truncf %28 : vector<16x128xf32> to vector<16x128xbf16>
    %c0_15 = arith.constant 0 : index
    %c0_16 = arith.constant 0 : index
    %30 = vector.load %arg14[%c0_15, %c0_16] : memref<16x128xf32, #tpu.memory_space<vmem>>, vector<16x128xf32>
    %31 = arith.truncf %18 : vector<128x128xf32> to vector<128x128xbf16>
    %cst_17 = arith.constant dense<0.000000e+00> : vector<16x128xf32>
    %32 = tpu.matmul %29, %31, %cst_17 {dimension_numbers = #tpu.dot_dimension_numbers<[1], [0], [0], [1], [0, 0, 1, 1], [], []>} : vector<16x128xbf16>, vector<128x128xbf16>, vector<16x128xf32> -> vector<16x128xf32>
    %33 = arith.addf %30, %32 : vector<16x128xf32>
    %c0_18 = arith.constant 0 : index
    %c0_19 = arith.constant 0 : index
    %34 = vector.load %arg14[%c0_18, %c0_19] : memref<16x128xf32, #tpu.memory_space<vmem>>, vector<16x128xf32>
    tpu.vector_store %arg14[%c0_18, %c0_19], %33 {strides = array<i32>} : memref<16x128xf32, #tpu.memory_space<vmem>>, vector<16x128xf32>,
    %c0_i32_20 = arith.constant 0 : i32
    %35 = arith.cmpi eq, %arg1, %c0_i32_20 : i32
    %36 = arith.extui %35 : i1 to i32
    %c0_i32_21 = arith.constant 0 : i32
    %37 = arith.cmpi ne, %36, %c0_i32_21 : i32
    scf.if %37 {
      %c0_22 = arith.constant 0 : index
      %c0_23 = arith.constant 0 : index
      %38 = vector.load %arg14[%c0_22, %c0_23] : memref<16x128xf32, #tpu.memory_space<vmem>>, vector<16x128xf32>
      %c0_24 = arith.constant 0 : index
      %c0_25 = arith.constant 0 : index
      %39 = vector.load %arg8[%c0_24, %c0_25] : memref<16x1xf32, #tpu.memory_space<vmem>>, vector<16x1xf32>
      %40 = vector.broadcast %39 : vector<16x1xf32> to vector<16x128xf32>
      %41 = arith.mulf %38, %40 : vector<16x128xf32>
      %c0_26 = arith.constant 0 : index
      %c0_27 = arith.constant 0 : index
      %42 = vector.load %arg6[%c0_26, %c0_27] : memref<16x128xbf16, #tpu.memory_space<vmem>>, vector<16x128xbf16>
      %c0_28 = arith.constant 0 : index
      %c0_29 = arith.constant 0 : index
      %43 = vector.load %arg10[%c0_28, %c0_29] : memref<128x128xbf16, #tpu.memory_space<vmem>>, vector<128x128xbf16>
      %cst_30 = arith.constant dense<0.000000e+00> : vector<16x128xf32>
      %44 = tpu.matmul %42, %43, %cst_30 {dimension_numbers = #tpu.dot_dimension_numbers<[1], [0], [0], [1], [0, 0, 1, 1], [], []>} : vector<16x128xbf16>, vector<128x128xbf16>, vector<16x128xf32> -> vector<16x128xf32>
      %45 = arith.addf %41, %44 : vector<16x128xf32>
      %c0_31 = arith.constant 0 : index
      %c0_32 = arith.constant 0 : index
      %46 = vector.load %arg7[%c0_31, %c0_32] : memref<16x128xf32, #tpu.memory_space<vmem>>, vector<16x128xf32>
      %47 = arith.truncf %46 : vector<16x128xf32> to vector<16x128xbf16>
      %c0_33 = arith.constant 0 : index
      %c0_34 = arith.constant 0 : index
      %48 = vector.load %arg11[%c0_33, %c0_34] : memref<128x128xbf16, #tpu.memory_space<vmem>>, vector<128x128xbf16>
      %cst_35 = arith.constant dense<0.000000e+00> : vector<16x128xf32>
      %49 = tpu.matmul %47, %48, %cst_35 {dimension_numbers = #tpu.dot_dimension_numbers<[1], [0], [0], [1], [0, 0, 1, 1], [], []>} : vector<16x128xbf16>, vector<128x128xbf16>, vector<16x128xf32> -> vector<16x128xf32>
      %c0_36 = arith.constant 0 : index
      %c0_37 = arith.constant 0 : index
      %50 = vector.load %arg12[%c0_36, %c0_37] : memref<1x128xf32, #tpu.memory_space<vmem>>, vector<1x128xf32>
      %51 = vector.broadcast %50 : vector<1x128xf32> to vector<16x128xf32>
      %52 = arith.addf %49, %51 : vector<16x128xf32>
      %53 = arith.negf %52 : vector<16x128xf32>
      %54 = math.exp %53 : vector<16x128xf32>
      %cst_38 = arith.constant 1.000000e+00 : f32
      %55 = vector.broadcast %cst_38 : f32 to vector<16x128xf32>
      %56 = arith.addf %55, %54 : vector<16x128xf32>
      %57 = arith.divf %55, %56 : vector<16x128xf32>
      %58 = arith.mulf %57, %45 : vector<16x128xf32>
      %cst_39 = arith.constant 1.000000e+00 : f32
      %59 = vector.broadcast %cst_39 : f32 to vector<16x128xf32>
      %60 = arith.subf %59, %57 : vector<16x128xf32>
      %61 = arith.mulf %60, %46 : vector<16x128xf32>
      %62 = arith.addf %58, %61 : vector<16x128xf32>
      %cst_40 = arith.constant 0.000000e+00 : f32
      %63 = vector.broadcast %cst_40 : f32 to vector<16x128xf32>
      %64 = arith.maximumf %62, %63 : vector<16x128xf32>
      %c0_41 = arith.constant 0 : index
      %c0_42 = arith.constant 0 : index
      %65 = vector.load %arg13[%c0_41, %c0_42] : memref<16x128xf32, #tpu.memory_space<vmem>>, vector<16x128xf32>
      tpu.vector_store %arg13[%c0_41, %c0_42], %64 {strides = array<i32>} : memref<16x128xf32, #tpu.memory_space<vmem>>, vector<16x128xf32>,
    } else {
    }
    return
  }
  func.func @transform_0(%arg0: i32, %arg1: i32) -> (i32, i32) {
    %c0_i32 = arith.constant 0 : i32
    %c0_i32_0 = arith.constant 0 : i32
    return %c0_i32, %arg1 : i32, i32
  }
  func.func @transform_1(%arg0: i32, %arg1: i32) -> (i32, i32) {
    %c0_i32 = arith.constant 0 : i32
    %c0_i32_0 = arith.constant 0 : i32
    return %c0_i32, %arg1 : i32, i32
  }
  func.func @transform_2(%arg0: i32, %arg1: i32) -> (i32, i32) {
    %c0_i32 = arith.constant 0 : i32
    %c0_i32_0 = arith.constant 0 : i32
    return %arg1, %c0_i32 : i32, i32
  }
  func.func @transform_3(%arg0: i32, %arg1: i32) -> (i32, i32) {
    %c0_i32 = arith.constant 0 : i32
    %c0_i32_0 = arith.constant 0 : i32
    %c0_i32_1 = arith.constant 0 : i32
    return %c0_i32, %c0_i32_0 : i32, i32
  }
  func.func @transform_4(%arg0: i32, %arg1: i32) -> (i32, i32) {
    %c0_i32 = arith.constant 0 : i32
    %c0_i32_0 = arith.constant 0 : i32
    return %arg0, %c0_i32 : i32, i32
  }
  func.func @transform_5(%arg0: i32, %arg1: i32) -> (i32, i32) {
    %c0_i32 = arith.constant 0 : i32
    %c0_i32_0 = arith.constant 0 : i32
    return %arg0, %c0_i32 : i32, i32
  }
  func.func @transform_6(%arg0: i32, %arg1: i32) -> (i32, i32) {
    %c0_i32 = arith.constant 0 : i32
    %c0_i32_0 = arith.constant 0 : i32
    return %arg0, %c0_i32 : i32, i32
  }
  func.func @transform_7(%arg0: i32, %arg1: i32) -> (i32, i32) {
    %c0_i32 = arith.constant 0 : i32
    %c0_i32_0 = arith.constant 0 : i32
    %c0_i32_1 = arith.constant 0 : i32
    return %c0_i32, %c0_i32_0 : i32, i32
  }
  func.func @transform_8(%arg0: i32, %arg1: i32) -> (i32, i32) {
    %c0_i32 = arith.constant 0 : i32
    %c0_i32_0 = arith.constant 0 : i32
    %c0_i32_1 = arith.constant 0 : i32
    return %c0_i32, %c0_i32_0 : i32, i32
  }
  func.func @transform_9(%arg0: i32, %arg1: i32) -> (i32, i32) {
    %c0_i32 = arith.constant 0 : i32
    %c0_i32_0 = arith.constant 0 : i32
    %c0_i32_1 = arith.constant 0 : i32
    return %c0_i32, %c0_i32_0 : i32, i32
  }
  func.func @transform_10(%arg0: i32, %arg1: i32) -> (i32, i32) {
    %c0_i32 = arith.constant 0 : i32
    %c0_i32_0 = arith.constant 0 : i32
    %c0_i32_1 = arith.constant 0 : i32
    return %c0_i32, %c0_i32_0 : i32, i32
  }
  func.func @transform_11(%arg0: i32, %arg1: i32) -> (i32, i32) {
    %c0_i32 = arith.constant 0 : i32
    %c0_i32_0 = arith.constant 0 : i32
    return %arg0, %c0_i32 : i32, i32
  }
}

</mosaic_0001>

<llo_original>
// kernel: rgcn_layer_forward.1
$region0: #{rgcn_layer_forward.1}
  #allocation0 [shape = 'u32[]', space=smem, size = 0x4, offset = 0x4, fixed_abs, tag = 'smem constant byte address 0x4 - core index']
  #allocation1 [shape = 'u32[72,128]{1,0:T(1,128)}', space=vmem, size = 0x9000, scoped, tag = 'internal scratch']
  #allocation2 [shape = 'f32[16,128]{1,0:T(8,128)}', space=vmem, size = 0x2000, scoped, tag = 'scratch operand']
  %s0 = inlined_call_operand.vmem [shape: s32[1,128], index: 0, kind: input, shape index: {}]
  %s1 = inlined_call_operand.vmem [shape: s32[1,128], index: 1, kind: input, shape index: {}]
  %s2 = inlined_call_operand.vmem [shape: bf16[128,128], index: 2, kind: input, shape index: {}]
  %s3 = inlined_call_operand.vmem [shape: bf16[16,128], index: 3, kind: input, shape index: {}, may-alias: {3,4}]
  %s4 = inlined_call_operand.vmem [shape: bf16[16,128], index: 4, kind: input, shape index: {}, may-alias: {3,4}]
  %s5 = inlined_call_operand.vmem [shape: f32[16,128], index: 5, kind: input, shape index: {}]
  %s6 = inlined_call_operand.vmem [shape: f32[16,1], index: 6, kind: input, shape index: {}]
  %s7 = inlined_call_operand.vmem [shape: bf16[128,128], index: 7, kind: input, shape index: {}]
  %s8 = inlined_call_operand.vmem [shape: bf16[128,128], index: 8, kind: input, shape index: {}]
  %s9 = inlined_call_operand.vmem [shape: bf16[128,128], index: 9, kind: input, shape index: {}]
  %s10 = inlined_call_operand.vmem [shape: f32[1,128], index: 10, kind: input, shape index: {}]
  %s11 = inlined_call_operand.hbm [shape: f32[16,128], index: 11, kind: output, shape index: {}]
  %s12 = sld [smem:[#allocation0]]
  $region62: #{rgcn_layer_forward.1} parent=0
    _
  %s14 = ssub.s32 1, %s12
  %s15 = scalar_select 0, %s14, %s12
  $region1: #{rgcn_layer_forward.1} parent=0
    #allocation3 [shape = 'u8[8192]{0}', space=vmem, size = 0x2000, scoped, tag = 'output window, operand 0, single buffered']
    #allocation4 [shape = 's32[1]{0}', space=sflag, size = 0x4, scoped, tag = 'scoped memory for rgcn_layer_forward.1']
    %16 = vsyncpa [#allocation4], 0
    // Predicated region
    $region2: #{rgcn_layer_forward.1} parent=1 // pred_check
      _
    $region3: #{rgcn_layer_forward.1} parent=1 // pred_check_branch
      %18 = sbr.rel (0) target = $region5
    $region4: #{rgcn_layer_forward.1} parent=1 // pred_region
      _
    $region5: #{rgcn_layer_forward.1} parent=1 // pred_fallthru
      _
    // Predicated region
    $region6: #{rgcn_layer_forward.1} parent=1 // pred_check
      _
    $region7: #{rgcn_layer_forward.1} parent=1 // pred_check_branch
      %20 = sbr.rel (0) target = $region9
    $region8: #{rgcn_layer_forward.1} parent=1 // pred_region
      _
    $region9: #{rgcn_layer_forward.1} parent=1 // pred_fallthru
      _
    // Predicated region
    $region10: #{rgcn_layer_forward.1} parent=1 // pred_check
      _
    $region11: #{rgcn_layer_forward.1} parent=1 // pred_check_branch
      %22 = sbr.rel (0) target = $region13
    $region12: #{rgcn_layer_forward.1} parent=1 // pred_region
      _
    $region13: #{rgcn_layer_forward.1} parent=1 // pred_fallthru
      _
    // Predicated region
    $region14: #{rgcn_layer_forward.1} parent=1 // pred_check
      _
    $region15: #{rgcn_layer_forward.1} parent=1 // pred_check_branch
      %24 = sbr.rel (0) target = $region17
    $region16: #{rgcn_layer_forward.1} parent=1 // pred_region
      _
    $region17: #{rgcn_layer_forward.1} parent=1 // pred_fallthru
      _
    // Predicated region
    $region18: #{rgcn_layer_forward.1} parent=1 // pred_check
      _
    $region19: #{rgcn_layer_forward.1} parent=1 // pred_check_branch
      %26 = sbr.rel (0) target = $region21
    $region20: #{rgcn_layer_forward.1} parent=1 // pred_region
      _
    $region21: #{rgcn_layer_forward.1} parent=1 // pred_fallthru
      _
    // Predicated region
    $region22: #{rgcn_layer_forward.1} parent=1 // pred_check
      _
    $region23: #{rgcn_layer_forward.1} parent=1 // pred_check_branch
      %28 = sbr.rel (0) target = $region25
    $region24: #{rgcn_layer_forward.1} parent=1 // pred_region
      _
    $region25: #{rgcn_layer_forward.1} parent=1 // pred_fallthru
      _
    // Predicated region
    $region26: #{rgcn_layer_forward.1} parent=1 // pred_check
      _
    $region27: #{rgcn_layer_forward.1} parent=1 // pred_check_branch
      %30 = sbr.rel (0) target = $region29
    $region28: #{rgcn_layer_forward.1} parent=1 // pred_region
      _
    $region29: #{rgcn_layer_forward.1} parent=1 // pred_fallthru
      _
    // Predicated region
    $region30: #{rgcn_layer_forward.1} parent=1 // pred_check
      _
    $region31: #{rgcn_layer_forward.1} parent=1 // pred_check_branch
      %32 = sbr.rel (0) target = $region33
    $region32: #{rgcn_layer_forward.1} parent=1 // pred_region
      _
    $region33: #{rgcn_layer_forward.1} parent=1 // pred_fallthru
      _
    // Predicated region
    $region34: #{rgcn_layer_forward.1} parent=1 // pred_check
      _
    $region35: #{rgcn_layer_forward.1} parent=1 // pred_check_branch
      %34 = sbr.rel (0) target = $region37
    $region36: #{rgcn_layer_forward.1} parent=1 // pred_region
      _
    $region37: #{rgcn_layer_forward.1} parent=1 // pred_fallthru
      _
    // Predicated region
    $region38: #{rgcn_layer_forward.1} parent=1 // pred_check
      _
    $region39: #{rgcn_layer_forward.1} parent=1 // pred_check_branch
      %36 = sbr.rel (0) target = $region41
    $region40: #{rgcn_layer_forward.1} parent=1 // pred_region
      _
    $region41: #{rgcn_layer_forward.1} parent=1 // pred_fallthru
      _
    // Predicated region
    $region42: #{rgcn_layer_forward.1} parent=1 // pred_check
      _
    $region43: #{rgcn_layer_forward.1} parent=1 // pred_check_branch
      %38 = sbr.rel (0) target = $region45
    $region44: #{rgcn_layer_forward.1} parent=1 // pred_region
      _
    $region45: #{rgcn_layer_forward.1} parent=1 // pred_fallthru
      _
    %p40 = scmp.eq.s32.totalorder 0, 0
    // Predicated region
    $region46: #{rgcn_layer_forward.1} parent=1 // pred_check
      %p41 = pneg %p40
    $region47: #{rgcn_layer_forward.1} parent=1 // pred_check_branch
      %43 = sbr.rel (%p41) target = $region49
    $region48: #{rgcn_layer_forward.1} parent=1 // pred_region
      %44 = vst [vmem:[#allocation2] sm:$0xff] 0.0
      %45 = vst [vmem:[#allocation2 + $0x8] sm:$0xff] 0.0
    $region49: #{rgcn_layer_forward.1} parent=1 // pred_fallthru
      _
    %v46 = vld [vmem:[%s0] sm:$0x1]
    %v47 = vlaneseq
    %v48 = vshrl.u32 %v47, 7
    %v49 = vadd.s32 %v48, 8
    %v50 = vperm.slane %v46, 0
    %vm51 = vcmp.eq.s32.totalorder %v48, %v50
    %vm52 = vcmp.eq.s32.totalorder %v49, %v50
    %v53 = vsel %vm51, 1.0, 0.0
    %v54 = vsel %vm52, 1.0, 0.0
    %v55 = vpack.c.bf16 %v54, %v53
    %v56 = vld [vmem:[%s3] sm:$0xf]
    %v57 = vld [vmem:[%s3 + $0x4] sm:$0xf]
    %v58 = vld [vmem:[%s2] sm:$0xf]
    %v59 = vld [vmem:[%s2 + $0x4] sm:$0xf]
    %v60 = vld [vmem:[%s2 + $0x8] sm:$0xf]
    %v61 = vld [vmem:[%s2 + $0xc] sm:$0xf]
    %v62 = vld [vmem:[%s2 + $0x10] sm:$0xf]
    %v63 = vld [vmem:[%s2 + $0x14] sm:$0xf]
    %v64 = vld [vmem:[%s2 + $0x18] sm:$0xf]
    %v65 = vld [vmem:[%s2 + $0x1c] sm:$0xf]
    %v66 = vld [vmem:[%s2 + $0x20] sm:$0xf]
    %v67 = vld [vmem:[%s2 + $0x24] sm:$0xf]
    %v68 = vld [vmem:[%s2 + $0x28] sm:$0xf]
    %v69 = vld [vmem:[%s2 + $0x2c] sm:$0xf]
    %v70 = vld [vmem:[%s2 + $0x30] sm:$0xf]
    %v71 = vld [vmem:[%s2 + $0x34] sm:$0xf]
    %v72 = vld [vmem:[%s2 + $0x38] sm:$0xf]
    %v73 = vld [vmem:[%s2 + $0x3c] sm:$0xf]
    %v74 = vunpack.c.l.bf16 %v58
    %v75 = vunpack.c.l.bf16 %v59
    %v76 = vunpack.c.l.bf16 %v60
    %v77 = vunpack.c.l.bf16 %v61
    %v78 = vunpack.c.l.bf16 %v62
    %v79 = vunpack.c.l.bf16 %v63
    %v80 = vunpack.c.l.bf16 %v64
    %v81 = vunpack.c.l.bf16 %v65
    %v82 = vunpack.c.l.bf16 %v66
    %v83 = vunpack.c.l.bf16 %v67
    %v84 = vunpack.c.l.bf16 %v68
    %v85 = vunpack.c.l.bf16 %v69
    %v86 = vunpack.c.l.bf16 %v70
    %v87 = vunpack.c.l.bf16 %v71
    %v88 = vunpack.c.l.bf16 %v72
    %v89 = vunpack.c.l.bf16 %v73
    %90 = vxpose.xlu0.c.b16.start [1/8] %v55, 128
    %91 = vxpose.xlu0.c.b16.cont [2/8] 0, 128
    %92 = vxpose.xlu0.c.b16.cont [3/8] 0, 128
    %93 = vxpose.xlu0.c.b16.cont [4/8] 0, 128
    %94 = vxpose.xlu0.c.b16.cont [5/8] 0, 128
    %95 = vxpose.xlu0.c.b16.cont [6/8] 0, 128
    %96 = vxpose.xlu0.c.b16.cont [7/8] 0, 128
    %97 = vxpose.xlu0.c.b16.end [8/8] 0, 128
    %v98 = vpop.trf.xlu0
    %v99 = vpop.trf.xlu0
    %v100 = vpop.trf.xlu0
    %v101 = vpop.trf.xlu0
    %v102 = vpop.trf.xlu0
    %v103 = vpop.trf.xlu0
    %v104 = vpop.trf.xlu0
    %v105 = vpop.trf.xlu0
    %v108 = vunpack.c.l.b16 %v56
    %v109 = vunpack.c.l.b16 %v57
    %v110 = vpack.c.b16 %v109, %v108
    %vm112 = vcmask 130048
    %v114 = vsel %vm112, %v98, 0
    %v117 = vsel %vm112, %v99, 0
    %v120 = vsel %vm112, %v100, 0
    %v123 = vsel %vm112, %v101, 0
    %v126 = vsel %vm112, %v102, 0
    %v129 = vsel %vm112, %v103, 0
    %v132 = vsel %vm112, %v104, 0
    %v135 = vsel %vm112, %v105, 0
    %137 = vmatpush.bf16.msra.mxu0 0
    %138 = vmatpush.bf16.msra.mxu0 0
    %139 = vmatpush.bf16.msra.mxu0 0
    %140 = vmatpush.bf16.msra.mxu0 0
    %141 = vmatpush.bf16.msra.mxu0 0
    %142 = vmatpush.bf16.msra.mxu0 0
    %143 = vmatpush.bf16.msra.mxu0 0
    %144 = vmatpush.bf16.msra.mxu0 %v110
    %145 = vmatmul.bf16.gmra.mxu0 %v114
    %v146 = vpop.f32.mrf.mxu0
    %v147 = vadd.f32 %v74, %v146
    %v148 = vpop.f32.mrf.mxu0
    %v149 = vadd.f32 %v75, %v148
    %150 = vmatmul.bf16.gmra.mxu0 %v117
    %v151 = vpop.f32.mrf.mxu0
    %v152 = vadd.f32 %v76, %v151
    %v153 = vpop.f32.mrf.mxu0
    %v154 = vadd.f32 %v77, %v153
    %155 = vmatmul.bf16.gmra.mxu0 %v120
    %v156 = vpop.f32.mrf.mxu0
    %v157 = vadd.f32 %v78, %v156
    %v158 = vpop.f32.mrf.mxu0
    %v159 = vadd.f32 %v79, %v158
    %160 = vmatmul.bf16.gmra.mxu0 %v123
    %v161 = vpop.f32.mrf.mxu0
    %v162 = vadd.f32 %v80, %v161
    %v163 = vpop.f32.mrf.mxu0
    %v164 = vadd.f32 %v81, %v163
    %165 = vmatmul.bf16.gmra.mxu0 %v126
    %v166 = vpop.f32.mrf.mxu0
    %v167 = vadd.f32 %v82, %v166
    %v168 = vpop.f32.mrf.mxu0
    %v169 = vadd.f32 %v83, %v168
    %170 = vmatmul.bf16.gmra.mxu0 %v129
    %v171 = vpop.f32.mrf.mxu0
    %v172 = vadd.f32 %v84, %v171
    %v173 = vpop.f32.mrf.mxu0
    %v174 = vadd.f32 %v85, %v173
    %175 = vmatmul.bf16.gmra.mxu0 %v132
    %v176 = vpop.f32.mrf.mxu0
    %v177 = vadd.f32 %v86, %v176
    %v178 = vpop.f32.mrf.mxu0
    %v179 = vadd.f32 %v87, %v178
    %180 = vmatmul.bf16.gmra.mxu0 %v135
    %v181 = vpop.f32.mrf.mxu0
    %v182 = vadd.f32 %v88, %v181
    %v183 = vpop.f32.mrf.mxu0
    %v184 = vadd.f32 %v89, %v183
    %185 = vdwg.mxu0
    %v186 = vpack.c.bf16 %v149, %v147
    %v187 = vpack.c.bf16 %v154, %v152
    %v188 = vpack.c.bf16 %v159, %v157
    %v189 = vpack.c.bf16 %v164, %v162
    %v190 = vpack.c.bf16 %v169, %v167
    %v191 = vpack.c.bf16 %v174, %v172
    %v192 = vpack.c.bf16 %v179, %v177
    %v193 = vpack.c.bf16 %v184, %v182
    %v194 = vld [vmem:[%s7] sm:$0xf]
    %v195 = vld [vmem:[%s7 + $0x4] sm:$0xf]
    %v196 = vld [vmem:[%s7 + $0x8] sm:$0xf]
    %v197 = vld [vmem:[%s7 + $0xc] sm:$0xf]
    %v198 = vld [vmem:[%s7 + $0x10] sm:$0xf]
    %v199 = vld [vmem:[%s7 + $0x14] sm:$0xf]
    %v200 = vld [vmem:[%s7 + $0x18] sm:$0xf]
    %v201 = vld [vmem:[%s7 + $0x1c] sm:$0xf]
    %v202 = vld [vmem:[%s7 + $0x20] sm:$0xf]
    %v203 = vld [vmem:[%s7 + $0x24] sm:$0xf]
    %v204 = vld [vmem:[%s7 + $0x28] sm:$0xf]
    %v205 = vld [vmem:[%s7 + $0x2c] sm:$0xf]
    %v206 = vld [vmem:[%s7 + $0x30] sm:$0xf]
    %v207 = vld [vmem:[%s7 + $0x34] sm:$0xf]
    %v208 = vld [vmem:[%s7 + $0x38] sm:$0xf]
    %v209 = vld [vmem:[%s7 + $0x3c] sm:$0xf]
    %v226 = vunpack.c.l.b16 %v194
    %v227 = vunpack.c.l.b16 %v195
    %v228 = vunpack.c.l.b16 %v196
    %v229 = vunpack.c.l.b16 %v197
    %v230 = vunpack.c.l.b16 %v198
    %v231 = vunpack.c.l.b16 %v199
    %v232 = vunpack.c.l.b16 %v200
    %v233 = vunpack.c.l.b16 %v201
    %v234 = vunpack.c.l.b16 %v202
    %v235 = vunpack.c.l.b16 %v203
    %v236 = vunpack.c.l.b16 %v204
    %v237 = vunpack.c.l.b16 %v205
    %v238 = vunpack.c.l.b16 %v206
    %v239 = vunpack.c.l.b16 %v207
    %v240 = vunpack.c.l.b16 %v208
    %v241 = vunpack.c.l.b16 %v209
    %v242 = vpack.c.b16 %v227, %v226
    %v243 = vpack.c.b16 %v229, %v228
    %v244 = vpack.c.b16 %v231, %v230
    %v245 = vpack.c.b16 %v233, %v232
    %v246 = vpack.c.b16 %v235, %v234
    %v247 = vpack.c.b16 %v237, %v236
    %v248 = vpack.c.b16 %v239, %v238
    %v249 = vpack.c.b16 %v241, %v240
    %258 = vmatpush.bf16.msra.mxu0 %v249
    %259 = vmatpush.bf16.msra.mxu0 %v248
    %260 = vmatpush.bf16.msra.mxu0 %v247
    %261 = vmatpush.bf16.msra.mxu0 %v246
    %262 = vmatpush.bf16.msra.mxu0 %v245
    %263 = vmatpush.bf16.msra.mxu0 %v244
    %264 = vmatpush.bf16.msra.mxu0 %v243
    %265 = vmatpush.bf16.msra.mxu0 %v242
    %266 = vmatmul.bf16.gmra.mxu0 %v186
    %v267 = vpop.f32.mrf.mxu0
    %v268 = vadd.f32 0.0, %v267
    %v269 = vpop.f32.mrf.mxu0
    %v270 = vadd.f32 0.0, %v269
    %271 = vmatmul.bf16.gmra.mxu0 %v187
    %v272 = vpop.f32.mrf.mxu0
    %v273 = vadd.f32 0.0, %v272
    %v274 = vpop.f32.mrf.mxu0
    %v275 = vadd.f32 0.0, %v274
    %276 = vmatmul.bf16.gmra.mxu0 %v188
    %v277 = vpop.f32.mrf.mxu0
    %v278 = vadd.f32 0.0, %v277
    %v279 = vpop.f32.mrf.mxu0
    %v280 = vadd.f32 0.0, %v279
    %281 = vmatmul.bf16.gmra.mxu0 %v189
    %v282 = vpop.f32.mrf.mxu0
    %v283 = vadd.f32 0.0, %v282
    %v284 = vpop.f32.mrf.mxu0
    %v285 = vadd.f32 0.0, %v284
    %286 = vmatmul.bf16.gmra.mxu0 %v190
    %v287 = vpop.f32.mrf.mxu0
    %v288 = vadd.f32 0.0, %v287
    %v289 = vpop.f32.mrf.mxu0
    %v290 = vadd.f32 0.0, %v289
    %291 = vmatmul.bf16.gmra.mxu0 %v191
    %v292 = vpop.f32.mrf.mxu0
    %v293 = vadd.f32 0.0, %v292
    %v294 = vpop.f32.mrf.mxu0
    %v295 = vadd.f32 0.0, %v294
    %296 = vmatmul.bf16.gmra.mxu0 %v192
    %v297 = vpop.f32.mrf.mxu0
    %v298 = vadd.f32 0.0, %v297
    %v299 = vpop.f32.mrf.mxu0
    %v300 = vadd.f32 0.0, %v299
    %301 = vmatmul.bf16.gmra.mxu0 %v193
    %v302 = vpop.f32.mrf.mxu0
    %v303 = vadd.f32 0.0, %v302
    %v304 = vpop.f32.mrf.mxu0
    %v305 = vadd.f32 0.0, %v304
    %306 = vdwg.mxu0
    %v307 = vld [vmem:[%s1] sm:$0x1]
    %s308 = smul.u32 0, 16
    %v309 = vstv %s308
    %v310 = vadd.s32 %v48, %v309
    %v311 = vadd.s32 %v49, %v309
    %v312 = vperm.slane %v307, 0
    %vm313 = vcmp.eq.s32.totalorder %v310, %v312
    %vm314 = vcmp.eq.s32.totalorder %v311, %v312
    %v315 = vsel %vm313, 1.0, 0.0
    %v316 = vsel %vm314, 1.0, 0.0
    %v317 = vpack.c.bf16 %v316, %v315
    %v318 = vld [vmem:[#allocation2] sm:$0xff]
    %v319 = vld [vmem:[#allocation2 + $0x8] sm:$0xff]
    %v320 = vpack.c.bf16 %v270, %v268
    %v321 = vpack.c.bf16 %v275, %v273
    %v322 = vpack.c.bf16 %v280, %v278
    %v323 = vpack.c.bf16 %v285, %v283
    %v324 = vpack.c.bf16 %v290, %v288
    %v325 = vpack.c.bf16 %v295, %v293
    %v326 = vpack.c.bf16 %v300, %v298
    %v327 = vpack.c.bf16 %v305, %v303
    %328 = vmatpush.bf16.msra.mxu0 %v327
    %329 = vmatpush.bf16.msra.mxu0 %v326
    %330 = vmatpush.bf16.msra.mxu0 %v325
    %331 = vmatpush.bf16.msra.mxu0 %v324
    %332 = vmatpush.bf16.msra.mxu0 %v323
    %333 = vmatpush.bf16.msra.mxu0 %v322
    %334 = vmatpush.bf16.msra.mxu0 %v321
    %335 = vmatpush.bf16.msra.mxu0 %v320
    %336 = vmatmul.bf16.gmra.mxu0 %v317
    %v337 = vpop.f32.mrf.mxu0
    %v338 = vadd.f32 0.0, %v337
    %v339 = vpop.f32.mrf.mxu0
    %v340 = vadd.f32 0.0, %v339
    %341 = vdwg.mxu0
    %v342 = vadd.f32 %v318, %v338
    %v343 = vadd.f32 %v319, %v340
    %344 = vst [vmem:[#allocation2] sm:$0xff] %v342
    %345 = vst [vmem:[#allocation2 + $0x8] sm:$0xff] %v343
    // Predicated region
    $region50: #{rgcn_layer_forward.1} parent=1 // pred_check
      %p346 = pneg %p40
    $region51: #{rgcn_layer_forward.1} parent=1 // pred_check_branch
      %348 = sbr.rel (%p346) target = $region53
    $region52: #{rgcn_layer_forward.1} parent=1 // pred_region
      %v349 = vld [vmem:[#allocation2] sm:$0xff]
      %v350 = vld [vmem:[#allocation2 + $0x8] sm:$0xff]
      %v351 = vld [vmem:[%s6] sm:$0xff]
      %v352 = vld [vmem:[%s6 + $0x8] sm:$0xff]
      %354 = vset.pattern.permute.xlu0 0
      %355 = vperm.xlu0 %354, %v351
      %v356 = vpop.permute.xlu0 %355
      %359 = vset.pattern.permute.xlu0 0
      %360 = vperm.xlu0 %359, %v352
      %v361 = vpop.permute.xlu0 %360
      %v363 = vmul.f32 %v349, %v356
      %v364 = vmul.f32 %v350, %v361
      %v365 = vld [vmem:[%s4] sm:$0xf]
      %v366 = vld [vmem:[%s4 + $0x4] sm:$0xf]
      %v367 = vld [vmem:[%s8] sm:$0xf]
      %v368 = vld [vmem:[%s8 + $0x4] sm:$0xf]
      %v369 = vld [vmem:[%s8 + $0x8] sm:$0xf]
      %v370 = vld [vmem:[%s8 + $0xc] sm:$0xf]
      %v371 = vld [vmem:[%s8 + $0x10] sm:$0xf]
      %v372 = vld [vmem:[%s8 + $0x14] sm:$0xf]
      %v373 = vld [vmem:[%s8 + $0x18] sm:$0xf]
      %v374 = vld [vmem:[%s8 + $0x1c] sm:$0xf]
      %v375 = vld [vmem:[%s8 + $0x20] sm:$0xf]
      %v376 = vld [vmem:[%s8 + $0x24] sm:$0xf]
      %v377 = vld [vmem:[%s8 + $0x28] sm:$0xf]
      %v378 = vld [vmem:[%s8 + $0x2c] sm:$0xf]
      %v379 = vld [vmem:[%s8 + $0x30] sm:$0xf]
      %v380 = vld [vmem:[%s8 + $0x34] sm:$0xf]
      %v381 = vld [vmem:[%s8 + $0x38] sm:$0xf]
      %v382 = vld [vmem:[%s8 + $0x3c] sm:$0xf]
      %v385 = vunpack.c.l.b16 %v365
      %v386 = vunpack.c.l.b16 %v366
      %v387 = vpack.c.b16 %v386, %v385
      %v405 = vunpack.c.l.b16 %v367
      %v406 = vunpack.c.l.b16 %v368
      %v407 = vunpack.c.l.b16 %v369
      %v408 = vunpack.c.l.b16 %v370
      %v409 = vunpack.c.l.b16 %v371
      %v410 = vunpack.c.l.b16 %v372
      %v411 = vunpack.c.l.b16 %v373
      %v412 = vunpack.c.l.b16 %v374
      %v413 = vunpack.c.l.b16 %v375
      %v414 = vunpack.c.l.b16 %v376
      %v415 = vunpack.c.l.b16 %v377
      %v416 = vunpack.c.l.b16 %v378
      %v417 = vunpack.c.l.b16 %v379
      %v418 = vunpack.c.l.b16 %v380
      %v419 = vunpack.c.l.b16 %v381
      %v420 = vunpack.c.l.b16 %v382
      %v421 = vpack.c.b16 %v406, %v405
      %v422 = vpack.c.b16 %v408, %v407
      %v423 = vpack.c.b16 %v410, %v409
      %v424 = vpack.c.b16 %v412, %v411
      %v425 = vpack.c.b16 %v414, %v413
      %v426 = vpack.c.b16 %v416, %v415
      %v427 = vpack.c.b16 %v418, %v417
      %v428 = vpack.c.b16 %v420, %v419
      %437 = vmatpush.bf16.msra.mxu0 %v428
      %438 = vmatpush.bf16.msra.mxu0 %v427
      %439 = vmatpush.bf16.msra.mxu0 %v426
      %440 = vmatpush.bf16.msra.mxu0 %v425
      %441 = vmatpush.bf16.msra.mxu0 %v424
      %442 = vmatpush.bf16.msra.mxu0 %v423
      %443 = vmatpush.bf16.msra.mxu0 %v422
      %444 = vmatpush.bf16.msra.mxu0 %v421
      %445 = vmatmul.bf16.gmra.mxu0 %v387
      %v446 = vpop.f32.mrf.mxu0
      %v447 = vadd.f32 0.0, %v446
      %v448 = vpop.f32.mrf.mxu0
      %v449 = vadd.f32 0.0, %v448
      %450 = vdwg.mxu0
      %v451 = vadd.f32 %v363, %v447
      %v452 = vadd.f32 %v364, %v449
      %v453 = vld [vmem:[%s5] sm:$0xff]
      %v454 = vld [vmem:[%s5 + $0x8] sm:$0xff]
      %v455 = vpack.c.bf16 %v454, %v453
      %v456 = vld [vmem:[%s9] sm:$0xf]
      %v457 = vld [vmem:[%s9 + $0x4] sm:$0xf]
      %v458 = vld [vmem:[%s9 + $0x8] sm:$0xf]
      %v459 = vld [vmem:[%s9 + $0xc] sm:$0xf]
      %v460 = vld [vmem:[%s9 + $0x10] sm:$0xf]
      %v461 = vld [vmem:[%s9 + $0x14] sm:$0xf]
      %v462 = vld [vmem:[%s9 + $0x18] sm:$0xf]
      %v463 = vld [vmem:[%s9 + $0x1c] sm:$0xf]
      %v464 = vld [vmem:[%s9 + $0x20] sm:$0xf]
      %v465 = vld [vmem:[%s9 + $0x24] sm:$0xf]
      %v466 = vld [vmem:[%s9 + $0x28] sm:$0xf]
      %v467 = vld [vmem:[%s9 + $0x2c] sm:$0xf]
      %v468 = vld [vmem:[%s9 + $0x30] sm:$0xf]
      %v469 = vld [vmem:[%s9 + $0x34] sm:$0xf]
      %v470 = vld [vmem:[%s9 + $0x38] sm:$0xf]
      %v471 = vld [vmem:[%s9 + $0x3c] sm:$0xf]
      %v472 = vld [vmem:[%s10] sm:$0x1]
      %v474 = vperm.slane %v472, 0
      %v492 = vunpack.c.l.b16 %v456
      %v493 = vunpack.c.l.b16 %v457
      %v494 = vunpack.c.l.b16 %v458
      %v495 = vunpack.c.l.b16 %v459
      %v496 = vunpack.c.l.b16 %v460
      %v497 = vunpack.c.l.b16 %v461
      %v498 = vunpack.c.l.b16 %v462
      %v499 = vunpack.c.l.b16 %v463
      %v500 = vunpack.c.l.b16 %v464
      %v501 = vunpack.c.l.b16 %v465
      %v502 = vunpack.c.l.b16 %v466
      %v503 = vunpack.c.l.b16 %v467
      %v504 = vunpack.c.l.b16 %v468
      %v505 = vunpack.c.l.b16 %v469
      %v506 = vunpack.c.l.b16 %v470
      %v507 = vunpack.c.l.b16 %v471
      %v508 = vpack.c.b16 %v493, %v492
      %v509 = vpack.c.b16 %v495, %v494
      %v510 = vpack.c.b16 %v497, %v496
      %v511 = vpack.c.b16 %v499, %v498
      %v512 = vpack.c.b16 %v501, %v500
      %v513 = vpack.c.b16 %v503, %v502
      %v514 = vpack.c.b16 %v505, %v504
      %v515 = vpack.c.b16 %v507, %v506
      %524 = vmatpush.bf16.msra.mxu0 %v515
      %525 = vmatpush.bf16.msra.mxu0 %v514
      %526 = vmatpush.bf16.msra.mxu0 %v513
      %527 = vmatpush.bf16.msra.mxu0 %v512
      %528 = vmatpush.bf16.msra.mxu0 %v511
      %529 = vmatpush.bf16.msra.mxu0 %v510
      %530 = vmatpush.bf16.msra.mxu0 %v509
      %531 = vmatpush.bf16.msra.mxu0 %v508
      %532 = vmatmul.bf16.gmra.mxu0 %v455
      %v533 = vpop.f32.mrf.mxu0
      %v534 = vadd.f32 %v474, %v533
      %v535 = vpop.f32.mrf.mxu0
      %v536 = vadd.f32 %v474, %v535
      %537 = vdwg.mxu0
      %v538 = vxor.u32 %v534, 2147483648
      %v539 = vxor.u32 %v536, 2147483648
      %v540 = vmul.f32 %v538, 1.442695
      %v541 = vpow.pop %v540
      %v542 = vmul.f32 %v539, 1.442695
      %v543 = vpow.pop %v542
      %v544 = vadd.f32 %v541, 1.0
      %v545 = vadd.f32 %v543, 1.0
      %v546 = vrcp.pop %v544
      %v547 = vmul.f32 %v544, %v546
      %v548 = vsub.f32 1.0, %v547
      %v549 = vmul.f32 %v546, %v548
      %v550 = vadd.f32 %v546, %v549
      %vm551 = vweird.f32 %v544
      %vm552 = vweird.f32 %v546
      %vm553 = vmor %vm551, %vm552
      %v554 = vsel %vm553, %v546, %v550
      %v555 = vand.u32 2147483647, %v544
      %vm556 = vcmp.eq.f32.partialorder %v555, 8.507059e+37
      %v557 = vand.u32 %v544, 2147483648
      %v558 = vor.u32 1.1754944e-38, %v557
      %v559 = vsel %vm556, %v558, %v554
      %v560 = vmul.f32 1.0, %v559
      %v561 = vrcp.pop %v545
      %v562 = vmul.f32 %v545, %v561
      %v563 = vsub.f32 1.0, %v562
      %v564 = vmul.f32 %v561, %v563
      %v565 = vadd.f32 %v561, %v564
      %vm566 = vweird.f32 %v545
      %vm567 = vweird.f32 %v561
      %vm568 = vmor %vm566, %vm567
      %v569 = vsel %vm568, %v561, %v565
      %v570 = vand.u32 2147483647, %v545
      %vm571 = vcmp.eq.f32.partialorder %v570, 8.507059e+37
      %v572 = vand.u32 %v545, 2147483648
      %v573 = vor.u32 1.1754944e-38, %v572
      %v574 = vsel %vm571, %v573, %v569
      %v575 = vmul.f32 1.0, %v574
      %v576 = vmul.f32 %v560, %v451
      %v577 = vmul.f32 %v575, %v452
      %v578 = vsub.f32 1.0, %v560
      %v579 = vsub.f32 1.0, %v575
      %v580 = vmul.f32 %v578, %v453
      %v581 = vmul.f32 %v579, %v454
      %v582 = vadd.f32 %v576, %v580
      %v583 = vadd.f32 %v577, %v581
      %v584 = vmax.f32 %v582, 0.0
      %v585 = vmax.f32 %v583, 0.0
      %586 = vst [vmem:[#allocation3] sm:$0xff] %v584
      %587 = vst [vmem:[#allocation3 + $0x8] sm:$0xff] %v585
    $region53: #{rgcn_layer_forward.1} parent=1 // pred_fallthru
      _
    // Predicated region
    $region54: #{rgcn_layer_forward.1} parent=1 // pred_check
      _
    $region55: #{rgcn_layer_forward.1} parent=1 // pred_check_branch
      %589 = sbr.rel (0) target = $region57
    $region56: #{rgcn_layer_forward.1} parent=1 // pred_region
      %591 = vsyncadd [#allocation4], 0
      %s592 = sshll.u32 [#allocation3], 4
      %s593 = int_to_ptr.vmem [resolvable:$true] %s592
      %s594 = sshll.u32 %s11, 4
      %s595 = int_to_ptr.hbm [resolvable:$true] %s594
      %600 = dma.vmem_to_hbm [thread:$0]  %s593, 256, %s595, [#allocation4], 128, 128, 8
    $region57: #{rgcn_layer_forward.1} parent=1 // pred_fallthru
      _
    // Predicated region
    $region58: #{rgcn_layer_forward.1} parent=1 // pred_check
      _
    $region59: #{rgcn_layer_forward.1} parent=1 // pred_check_branch
      %602 = sbr.rel (0) target = $region61
    $region60: #{rgcn_layer_forward.1} parent=1 // pred_region
      %604 = dma.done [#allocation4], 256
    $region61: #{rgcn_layer_forward.1} parent=1 // pred_fallthru
      _
    %605 = vsyncpa [#allocation4], 1

</llo_original>
